<compile_context>
chip_gen: v7x
topology: tpu7x:2x2x1
jax: 0.10.0
libtpu: 0.0.40
codegen_flags: <defaults>
</compile_context>

<pallas_src>
import functools
import math

import jax
import jax.numpy as jnp
from jax.experimental import pallas as pl
from jax.experimental.pallas import tpu as pltpu


def make_positional_encoding_table(d_model: int, max_len: int = 5000) -> jnp.ndarray:
    """Deterministic buffer construction, mirroring the PyTorch __init__."""
    position = jnp.arange(0, max_len, dtype=jnp.float32)[:, None]          # (max_len, 1)
    div_term = jnp.exp(jnp.arange(0, d_model, 2, dtype=jnp.float32)
                       * (-math.log(10000.0) / d_model))                    # (d_model//2,)
    angles = position * div_term                                            # (max_len, d_model//2)
    pe = jnp.zeros((max_len, d_model), dtype=jnp.float32)
    pe = pe.at[:, 0::2].set(jnp.sin(angles))
    pe = pe.at[:, 1::2].set(jnp.cos(angles))
    return pe                                                               # (max_len, d_model)


# ----------------------------- kernel bodies --------------------------------

def _apply_dropout(y, bits, threshold, scale):
    """Zero with prob p, scale survivors by 1/(1-p); uint32 threshold compare."""
    keep = bits >= jnp.uint32(threshold)            # P(keep) = 1 - p
    return jnp.where(keep, y * scale, jnp.zeros_like(y))


def _pe_kernel_flat(x_ref, pe_ref, o_ref, *, n_rep, d_model):
    # Lane-dense inference path: x_ref / o_ref: (tile_s, B*D); pe_ref: (tile_s, D).
    pe = pe_ref[...]
    for b in range(n_rep):                          # static, 128-aligned batch slabs
        sl = slice(b * d_model, (b + 1) * d_model)
        o_ref[:, sl] = (x_ref[:, sl] + pe).astype(o_ref.dtype)


def _pe_kernel_flat_dropout(x_ref, pe_ref, bits_ref, o_ref, *,
                            n_rep, d_model, threshold, scale):
    # Lane-dense training path; bits_ref: (tile_s, B*D) uint32.
    pe = pe_ref[...]
    for b in range(n_rep):
        sl = slice(b * d_model, (b + 1) * d_model)
        y = x_ref[:, sl] + pe
        o_ref[:, sl] = _apply_dropout(y, bits_ref[:, sl], threshold, scale).astype(o_ref.dtype)


def _pe_kernel_3d(x_ref, pe_ref, o_ref):
    # Fallback (D % 128 != 0): x_ref / o_ref: (tile_s, B, D); pe_ref: (tile_s, 1, D).
    o_ref[...] = (x_ref[...] + pe_ref[...]).astype(o_ref.dtype)


def _pe_kernel_3d_dropout(x_ref, pe_ref, bits_ref, o_ref, *, threshold, scale):
    y = x_ref[...] + pe_ref[...]
    o_ref[...] = _apply_dropout(y, bits_ref[...], threshold, scale).astype(o_ref.dtype)


# --------------------------------- wrapper ----------------------------------

def _choose_tile_s(S, row_bytes, target_block_bytes, sublane_multiple):
    """Largest sequence tile (multiple of sublane packing) within the byte budget,
    clamped so the grid has >= 2 steps whenever S allows it (pipelining / v7x 2-TC)."""
    s_pad = -(-S // sublane_multiple) * sublane_multiple
    rows = (target_block_bytes // max(row_bytes, 1)) // sublane_multiple * sublane_multiple
    tile = max(sublane_multiple, min(rows, s_pad))
    if tile >= s_pad and s_pad >= 2 * sublane_multiple:
        half = -(-(s_pad // 2) // sublane_multiple) * sublane_multiple
        tile = max(sublane_multiple, half)
    return int(tile)


def positional_encoding(x, pe_table, *, dropout_p=0.1, training=False, rng_key=None,
                        target_block_bytes=2 << 20, donate_x=False):
    """dropout(x + pe[:S]); x: (S, B, D), pe_table: (max_len, D)."""
    S, B, D = x.shape
    max_len, d_pe = pe_table.shape
    assert d_pe == D and S <= max_len
    assert 0.0 <= dropout_p < 1.0

    use_dropout = bool(training) and dropout_p > 0.0
    itemsize = jnp.dtype(x.dtype).itemsize
    sublane_multiple = max(8, 32 // itemsize)        # 8 for f32, 16 for bf16
    tile_s = _choose_tile_s(S, B * D * itemsize, target_block_bytes, sublane_multiple)
    grid = (pl.cdiv(S, tile_s),)

    # dtype-match pe once in the wrapper (bf16 add on v6e/v7x; no-op for f32).
    pe = pe_table.astype(x.dtype)

    if use_dropout:
        threshold = min(2 ** 32 - 1, max(0, int(round(dropout_p * 2.0 ** 32))))
        scale = 1.0 / (1.0 - dropout_p)
        if rng_key is None:
            rng_key = jax.random.PRNGKey(0)
        # TODO(synk): mask RNG stream differs from torch.nn.Dropout (semantics match);
        # it also depends on tile layout only through nothing here (bits are per-element).

    lane_dense = (D % 128 == 0)
    if lane_dense:
        # Zero-cost row-major view: sublanes = tile_s (8-multiple), lanes = B*D (128-multiple)
        # -> unmasked full-width vector stores.
        x_in = x.reshape(S, B * D)
        x_spec = pl.BlockSpec((tile_s, B * D), lambda i: (i, 0))
        pe_in = pe
        pe_spec = pl.BlockSpec((tile_s, D), lambda i: (i, 0))
        out_sds = jax.ShapeDtypeStruct((S, B * D), x.dtype)
        if use_dropout:
            kernel = functools.partial(_pe_kernel_flat_dropout, n_rep=B, d_model=D,
                                       threshold=threshold, scale=scale)
        else:
            kernel = functools.partial(_pe_kernel_flat, n_rep=B, d_model=D)
    else:
        # Last two block dims equal the full array dims -> always legal; only used
        # for shapes where D is not a 128-multiple (toy / odd d_model).
        x_in = x
        x_spec = pl.BlockSpec((tile_s, B, D), lambda i: (i, 0, 0))
        pe_in = pe.reshape(max_len, 1, D)            # stride-0 batch broadcast in-kernel
        pe_spec = pl.BlockSpec((tile_s, 1, D), lambda i: (i, 0, 0))
        out_sds = jax.ShapeDtypeStruct((S, B, D), x.dtype)
        if use_dropout:
            kernel = functools.partial(_pe_kernel_3d_dropout, threshold=threshold, scale=scale)
        else:
            kernel = _pe_kernel_3d

    inputs = [x_in, pe_in]
    in_specs = [x_spec, pe_spec]
    if use_dropout:
        bits = jax.random.bits(rng_key, shape=x_in.shape, dtype=jnp.uint32)
        inputs.append(bits)
        in_specs.append(x_spec)                      # same tiling as x

    # Explicit VMEM cap derived from the actual double-buffered footprint
    # (2 bufs x (x block + out block + bits block + pe block) + temp headroom).
    x_block_bytes = tile_s * B * D * itemsize
    pe_block_bytes = tile_s * D * itemsize
    bits_block_bytes = tile_s * B * D * 4 if use_dropout else 0
    footprint = 2 * (2 * x_block_bytes + pe_block_bytes + bits_block_bytes) + (2 << 20)
    vmem_limit = int(min(max(footprint, 24 << 20), 48 << 20))

    out = pl.pallas_call(
        kernel,
        out_shape=out_sds,
        grid=grid,
        in_specs=in_specs,
        out_specs=x_spec,
        compiler_params=pltpu.CompilerParams(
            dimension_semantics=("parallel",),       # independent tiles -> v7x megacore
            vmem_limit_bytes=vmem_limit),
        # x is input index 0 (no scalar prefetch operand anymore); enable only
        # when the caller no longer needs x.
        input_output_aliases=({0: 0} if donate_x else {}),
    )(*inputs)

    return out.reshape(S, B, D)


# ----------------------------------- test ------------------------------------

if __name__ == "__main__":
    # Path A: module's toy shapes (d_model=32 -> 3-D fallback path).
    S, B, D = 8, 2, 32
    x = jax.random.normal(jax.random.PRNGKey(0), (S, B, D), dtype=jnp.float32)
    pe_tab = make_positional_encoding_table(D, max_len=5000)

    out = jax.block_until_ready(positional_encoding(x, pe_tab, training=False))
    ref = x + pe_tab[:S][:, None, :]
    assert out.shape == (S, B, D)
    assert jnp.allclose(out, ref, atol=1e-6), "3-D path mismatch vs. reference"

    # Path B: lane-dense flattened path (d_model % 128 == 0) with a multi-step
    # grid (small target_block_bytes forces several tiles even at toy size).
    S2, B2, D2 = 64, 2, 128
    x2 = jax.random.normal(jax.random.PRNGKey(1), (S2, B2, D2), dtype=jnp.float32)
    pe_tab2 = make_positional_encoding_table(D2, max_len=5000)

    out2 = jax.block_until_ready(
        positional_encoding(x2, pe_tab2, training=False, target_block_bytes=8 * 1024))
    ref2 = x2 + pe_tab2[:S2][:, None, :]
    assert out2.shape == (S2, B2, D2)
    assert jnp.allclose(out2, ref2, atol=1e-6), "lane-dense path mismatch vs. reference"

    # Training mode (dropout): every element must be either 0 (dropped) or the
    # reference value scaled by 1/(1-p) (kept).
    p = 0.1
    scale = 1.0 / (1.0 - p)
    key = jax.random.PRNGKey(123)
    t1 = jax.block_until_ready(
        positional_encoding(x, pe_tab, dropout_p=p, training=True, rng_key=key))
    t2 = jax.block_until_ready(
        positional_encoding(x2, pe_tab2, dropout_p=p, training=True, rng_key=key,
                            target_block_bytes=8 * 1024))
    assert t1.shape == (S, B, D) and t2.shape == (S2, B2, D2)
    ok1 = bool(jnp.all(jnp.isclose(t1, ref * scale, atol=1e-5) | (t1 == 0)))
    ok2 = bool(jnp.all(jnp.isclose(t2, ref2 * scale, atol=1e-5) | (t2 == 0)))
    assert ok1 and ok2, "dropout output is not {0, ref/(1-p)}-valued"

    print("KERNEL_OK")
</pallas_src>

<mosaic_0001>
module attributes {stable_mosaic.version = 11 : i64} {
  func.func @_pe_kernel_3d(%arg0: i32, %arg1: memref<8x2x32xf32, #tpu.memory_space<vmem>>, %arg2: memref<8x1x32xf32, #tpu.memory_space<vmem>>, %arg3: memref<8x2x32xf32, #tpu.memory_space<vmem>>) attributes {dimension_semantics = [#tpu.dimension_semantics<parallel>], iteration_bounds = array<i64: 1>, scalar_prefetch = 0 : i64, scratch_operands = 0 : i64, tpu.core_type = #tpu.core_type<tc>, window_params = [{transform_indices = @transform_0, window_bounds = array<i64: 8, 2, 32>}, {transform_indices = @transform_1, window_bounds = array<i64: 8, 1, 32>}, {transform_indices = @transform_2, window_bounds = array<i64: 8, 2, 32>}]} {
    %c0 = arith.constant 0 : index
    %c0_0 = arith.constant 0 : index
    %c0_1 = arith.constant 0 : index
    %0 = vector.load %arg1[%c0, %c0_0, %c0_1] : memref<8x2x32xf32, #tpu.memory_space<vmem>>, vector<8x2x32xf32>
    %c0_2 = arith.constant 0 : index
    %c0_3 = arith.constant 0 : index
    %c0_4 = arith.constant 0 : index
    %1 = vector.load %arg2[%c0_2, %c0_3, %c0_4] : memref<8x1x32xf32, #tpu.memory_space<vmem>>, vector<8x1x32xf32>
    %2 = vector.broadcast %1 : vector<8x1x32xf32> to vector<8x2x32xf32>
    %3 = arith.addf %0, %2 : vector<8x2x32xf32>
    %c0_5 = arith.constant 0 : index
    %c0_6 = arith.constant 0 : index
    %c0_7 = arith.constant 0 : index
    %4 = vector.load %arg3[%c0_5, %c0_6, %c0_7] : memref<8x2x32xf32, #tpu.memory_space<vmem>>, vector<8x2x32xf32>
    tpu.vector_store %arg3[%c0_5, %c0_6, %c0_7], %3 {strides = array<i32>} : memref<8x2x32xf32, #tpu.memory_space<vmem>>, vector<8x2x32xf32>,
    return
  }
  func.func @transform_0(%arg0: i32) -> (i32, i32, i32) {
    %c0_i32 = arith.constant 0 : i32
    %c0_i32_0 = arith.constant 0 : i32
    %c0_i32_1 = arith.constant 0 : i32
    return %arg0, %c0_i32, %c0_i32_0 : i32, i32, i32
  }
  func.func @transform_1(%arg0: i32) -> (i32, i32, i32) {
    %c0_i32 = arith.constant 0 : i32
    %c0_i32_0 = arith.constant 0 : i32
    %c0_i32_1 = arith.constant 0 : i32
    return %arg0, %c0_i32, %c0_i32_0 : i32, i32, i32
  }
  func.func @transform_2(%arg0: i32) -> (i32, i32, i32) {
    %c0_i32 = arith.constant 0 : i32
    %c0_i32_0 = arith.constant 0 : i32
    %c0_i32_1 = arith.constant 0 : i32
    return %arg0, %c0_i32, %c0_i32_0 : i32, i32, i32
  }
}

</mosaic_0001>

<llo_original>
// kernel: tpu_custom_call.1
$region0: #{tpu_custom_call.1}
  #allocation0 [shape = 'u32[]', space=smem, size = 0x4, offset = 0x4, fixed_abs, tag = 'smem constant byte address 0x4 - core index']
  #allocation1 [shape = 'u32[144,128]{1,0:T(1,128)}', space=vmem, size = 0x12000, scoped, tag = 'internal scratch']
  %s0 = inlined_call_operand.vmem [shape: f32[8,2,32], index: 0, kind: input, shape index: {}]
  %s1 = inlined_call_operand.vmem [shape: f32[5000,1,32], index: 1, kind: input, shape index: {}]
  %s2 = inlined_call_operand.hbm [shape: f32[8,2,32], index: 2, kind: output, shape index: {}]
  %s3 = sld [smem:[#allocation0]]
  $region18: #{tpu_custom_call.1} parent=0
    _
  %s5 = ssub.s32 1, %s3
  %s6 = scalar_select 0, %s5, %s3
  $region1: #{tpu_custom_call.1} parent=0
    #allocation2 [shape = 'u8[8192]{0}', space=vmem, size = 0x2000, scoped, tag = 'output window, operand 0, single buffered']
    #allocation3 [shape = 's32[1]{0}', space=sflag, size = 0x4, scoped, tag = 'scoped memory for tpu_custom_call.1']
    %7 = vsyncpa [#allocation3], 0
    // Predicated region
    $region2: #{tpu_custom_call.1} parent=1 // pred_check
      _
    $region3: #{tpu_custom_call.1} parent=1 // pred_check_branch
      %9 = sbr.rel (0) target = $region5
    $region4: #{tpu_custom_call.1} parent=1 // pred_region
      _
    $region5: #{tpu_custom_call.1} parent=1 // pred_fallthru
      _
    // Predicated region
    $region6: #{tpu_custom_call.1} parent=1 // pred_check
      _
    $region7: #{tpu_custom_call.1} parent=1 // pred_check_branch
      %11 = sbr.rel (0) target = $region9
    $region8: #{tpu_custom_call.1} parent=1 // pred_region
      _
    $region9: #{tpu_custom_call.1} parent=1 // pred_fallthru
      _
    %v12 = vld [vmem:[%s0] sm:$0x3]
    %v13 = vld [vmem:[%s0 + $0x2] sm:$0x3]
    %v14 = vld [vmem:[%s0 + $0x4] sm:$0x3]
    %v15 = vld [vmem:[%s0 + $0x6] sm:$0x3]
    %v16 = vld [vmem:[%s0 + $0x8] sm:$0x3]
    %v17 = vld [vmem:[%s0 + $0xa] sm:$0x3]
    %v18 = vld [vmem:[%s0 + $0xc] sm:$0x3]
    %v19 = vld [vmem:[%s0 + $0xe] sm:$0x3]
    %v20 = vld [vmem:[%s1] sm:$0x1]
    %v21 = vld [vmem:[%s1 + $0x1] sm:$0x1]
    %v22 = vld [vmem:[%s1 + $0x2] sm:$0x1]
    %v23 = vld [vmem:[%s1 + $0x3] sm:$0x1]
    %v24 = vld [vmem:[%s1 + $0x4] sm:$0x1]
    %v25 = vld [vmem:[%s1 + $0x5] sm:$0x1]
    %v26 = vld [vmem:[%s1 + $0x6] sm:$0x1]
    %v27 = vld [vmem:[%s1 + $0x7] sm:$0x1]
    %v36 = vlaneseq
    %v37 = vshrl.u32 %v36, 7
    %v38 = vsub.s32 0, %v37
    %v39 = vrot.slane %v20, %v38
    %v40 = vlaneseq
    %v41 = vshrl.u32 %v40, 7
    %v42 = vsub.s32 0, %v41
    %v43 = vrot.slane %v21, %v42
    %v44 = vlaneseq
    %v45 = vshrl.u32 %v44, 7
    %v46 = vsub.s32 0, %v45
    %v47 = vrot.slane %v22, %v46
    %v48 = vlaneseq
    %v49 = vshrl.u32 %v48, 7
    %v50 = vsub.s32 0, %v49
    %v51 = vrot.slane %v23, %v50
    %v52 = vlaneseq
    %v53 = vshrl.u32 %v52, 7
    %v54 = vsub.s32 0, %v53
    %v55 = vrot.slane %v24, %v54
    %v56 = vlaneseq
    %v57 = vshrl.u32 %v56, 7
    %v58 = vsub.s32 0, %v57
    %v59 = vrot.slane %v25, %v58
    %v60 = vlaneseq
    %v61 = vshrl.u32 %v60, 7
    %v62 = vsub.s32 0, %v61
    %v63 = vrot.slane %v26, %v62
    %v64 = vlaneseq
    %v65 = vshrl.u32 %v64, 7
    %v66 = vsub.s32 0, %v65
    %v67 = vrot.slane %v27, %v66
    %v76 = vadd.f32 %v12, %v39
    %v77 = vadd.f32 %v13, %v43
    %v78 = vadd.f32 %v14, %v47
    %v79 = vadd.f32 %v15, %v51
    %v80 = vadd.f32 %v16, %v55
    %v81 = vadd.f32 %v17, %v59
    %v82 = vadd.f32 %v18, %v63
    %v83 = vadd.f32 %v19, %v67
    %vm84 = vcmask 254976
    %85 = vst.msk [vmem:[#allocation2] sm:$0x3] %vm84, %v76
    %86 = vst.msk [vmem:[#allocation2 + $0x2] sm:$0x3] %vm84, %v77
    %87 = vst.msk [vmem:[#allocation2 + $0x4] sm:$0x3] %vm84, %v78
    %88 = vst.msk [vmem:[#allocation2 + $0x6] sm:$0x3] %vm84, %v79
    %89 = vst.msk [vmem:[#allocation2 + $0x8] sm:$0x3] %vm84, %v80
    %90 = vst.msk [vmem:[#allocation2 + $0xa] sm:$0x3] %vm84, %v81
    %91 = vst.msk [vmem:[#allocation2 + $0xc] sm:$0x3] %vm84, %v82
    %92 = vst.msk [vmem:[#allocation2 + $0xe] sm:$0x3] %vm84, %v83
    // Predicated region
    $region10: #{tpu_custom_call.1} parent=1 // pred_check
      _
    $region11: #{tpu_custom_call.1} parent=1 // pred_check_branch
      %94 = sbr.rel (0) target = $region13
    $region12: #{tpu_custom_call.1} parent=1 // pred_region
      %s96 = ssub.s32 256, 256
      %97 = vsyncadd [#allocation3], %s96
      %s98 = sshll.u32 [#allocation2], 4
      %s99 = int_to_ptr.vmem [resolvable:$true] %s98
      %104 = dma.vmem_to_hbm [thread:$0]  %s99, 256, %s2, [#allocation3], 32, 32, 2
    $region13: #{tpu_custom_call.1} parent=1 // pred_fallthru
      _
    // Predicated region
    $region14: #{tpu_custom_call.1} parent=1 // pred_check
      _
    $region15: #{tpu_custom_call.1} parent=1 // pred_check_branch
      %106 = sbr.rel (0) target = $region17
    $region16: #{tpu_custom_call.1} parent=1 // pred_region
      %107 = dma.done [#allocation3], 256
    $region17: #{tpu_custom_call.1} parent=1 // pred_fallthru
      _
    %108 = vsyncpa [#allocation3], 1

</llo_original>
